<compile_context>
chip_gen: v6e
topology: v6e:2x2x1
jax: 0.10.0
libtpu: 0.0.40
codegen_flags: <defaults>
</compile_context>

<pallas_src>
import functools

import jax
import jax.numpy as jnp
from jax.experimental import pallas as pl
from jax.experimental.pallas import tpu as pltpu


def _round_up(x, m):
    return ((x + m - 1) // m) * m


def _kd_block_kernel(t_ref, ys_ref, yt_ref, out_ref, *, B, C, TB):
    """One batch tile: partial sum of p_t * (log p_t - log p_s) with standardized logits."""
    i = pl.program_id(0)
    T = t_ref[0]

    ys = ys_ref[...].astype(jnp.float32)          # (TB, C)
    yt = yt_ref[...].astype(jnp.float32)

    rows_ragged = (B % TB) != 0
    if rows_ragged:
        # Rows past B in the final (clipped) tile hold undefined data; zero them
        # before the row statistics so they cannot pollute mean / std / softmax.
        row_ids = jax.lax.broadcasted_iota(jnp.int32, (TB, 1), 0) + i * TB
        row_valid = row_ids < B                    # (TB, 1)
        ys = jnp.where(row_valid, ys, 0.0)
        yt = jnp.where(row_valid, yt, 0.0)

    inv_c = 1.0 / C
    inv_cm1 = 1.0 / (C - 1)

    def norm_scaled(x):
        # Two-pass mean/var (unbiased, matches torch.std default), robust to
        # catastrophic cancellation when the logit mean is large, with a single
        # per-row multiply folding both 1/(eps+std) and 1/T.
        mean = jnp.sum(x, axis=-1, keepdims=True) * inv_c
        d = x - mean
        var = jnp.sum(d * d, axis=-1, keepdims=True) * inv_cm1
        stdv = jnp.sqrt(var)
        scale = pl.reciprocal((1e-07 + stdv) * T, approx=False)
        return d * scale

    zs = norm_scaled(ys)
    zt = norm_scaled(yt)

    # student log-softmax (numerically stable)
    zs_sh = zs - jnp.max(zs, axis=-1, keepdims=True)
    log_ps = zs_sh - jnp.log(jnp.sum(jnp.exp(zs_sh), axis=-1, keepdims=True))

    # teacher softmax + log-softmax (numerically stable)
    zt_sh = zt - jnp.max(zt, axis=-1, keepdims=True)
    et = jnp.exp(zt_sh)
    et_sum = jnp.sum(et, axis=-1, keepdims=True)
    pt = et * pl.reciprocal(et_sum, approx=False)
    log_pt = zt_sh - jnp.log(et_sum)

    row_kl = jnp.sum(pt * (log_pt - log_ps), axis=-1, keepdims=True)   # (TB, 1)
    if rows_ragged:
        row_kl = jnp.where(row_valid, row_kl, 0.0)

    partial = jnp.sum(row_kl)                                          # per-block scalar
    out_ref[...] = jnp.full((1, 8, 128), partial, dtype=jnp.float32)


@jax.jit
def _distill_kl_impl(y_s, y_t, t_arr):
    B, C = y_s.shape
    itemsize = jnp.dtype(y_s.dtype).itemsize
    # Sublane-packing multiple: 8 for f32, 16 for bf16, 32 for 8-bit dtypes.
    row_mult = max(8, 32 // itemsize)

    # --- batch-tile selection ---
    # ~2 MiB of f32 per (TB, C_pad) input tile: large enough to amortize the
    # fixed per-grid-step overhead on v6e/v7x, small enough that the
    # double-buffered inputs plus in-kernel f32 temporaries stay well under the
    # 48 MiB VMEM limit below (v7x has only 64 MiB physical VMEM per TC).
    C_pad = _round_up(C, 128)                     # lane-padded width resident in VMEM
    target_f32_elems = 512 * 1024                 # ~2 MiB per f32 tile
    TB = max(row_mult, (target_f32_elems // C_pad) // row_mult * row_mult)
    TB = min(TB, _round_up(B, row_mult))          # never larger than the (rounded) batch

    num_blocks = pl.cdiv(B, TB)

    kernel = functools.partial(_kd_block_kernel, B=B, C=C, TB=TB)

    partials = pl.pallas_call(
        kernel,
        out_shape=jax.ShapeDtypeStruct((num_blocks, 8, 128), jnp.float32),
        grid=(num_blocks,),
        in_specs=[
            pl.BlockSpec(memory_space=pltpu.SMEM),          # temperature scalar
            # Class axis uses the full array dim (allowed by the (8,128) rule even
            # when C % 128 != 0), so no host padding / column masks are needed.
            pl.BlockSpec((TB, C), lambda i: (i, 0)),        # y_s batch tile
            pl.BlockSpec((TB, C), lambda i: (i, 0)),        # y_t batch tile
        ],
        out_specs=pl.BlockSpec((1, 8, 128), lambda i: (i, 0, 0)),  # per-block partial sum
        compiler_params=pltpu.CompilerParams(
            # Blocks are independent (no sequential accumulator) -> batch axis can
            # be sharded across both TensorCores on v7x; harmless on v5e/v6e.
            dimension_semantics=("parallel",),
            vmem_limit_bytes=48 * 1024 * 1024,
        ),
        cost_estimate=pl.CostEstimate(
            flops=int(40 * B * C),
            transcendentals=int(3 * B * C),
            bytes_accessed=int(2 * B * C * itemsize + num_blocks * 8 * 128 * 4),
        ),
    )(t_arr, y_s, y_t)

    T = t_arr[0]
    kl_sum = jnp.sum(partials[:, 0, 0])
    # KLDivLoss(batchmean) -> /B, then * T*T, then / y_s.numel() (= B*C).
    return kl_sum * T * T / (B * B * C)


def distill_kl_logit_stand(y_s, y_t, temp):
    """JAX/Pallas equivalent of DistillKL_logit_stand.forward(y_s, y_t, temp)."""
    assert y_s.ndim == 2 and y_s.shape == y_t.shape
    t_arr = jnp.asarray(temp, dtype=jnp.float32).reshape((1,))
    return _distill_kl_impl(y_s, y_t, t_arr)


def _reference(y_s, y_t, temp):
    """Pure-JAX reference for validation (mirrors the PyTorch module exactly)."""
    ys = y_s.astype(jnp.float32)
    yt = y_t.astype(jnp.float32)
    C = ys.shape[-1]

    def normalize(x):
        mean = jnp.mean(x, axis=-1, keepdims=True)
        stdv = jnp.sqrt(jnp.sum((x - mean) ** 2, axis=-1, keepdims=True) / (C - 1))
        return (x - mean) / (1e-07 + stdv)

    T = jnp.float32(temp)
    log_ps = jax.nn.log_softmax(normalize(ys) / T, axis=1)
    pt = jax.nn.softmax(normalize(yt) / T, axis=1)
    log_pt = jax.nn.log_softmax(normalize(yt) / T, axis=1)
    kl = jnp.sum(pt * (log_pt - log_ps)) / ys.shape[0]
    return kl * T * T / ys.size


if __name__ == "__main__":
    key = jax.random.PRNGKey(0)
    k1, k2, k3, k4 = jax.random.split(key, 4)

    temp = 4  # temperature (int, like PyTorch usage)

    # Aligned case: batch of 8 logits over 128 classes.
    B, C = 8, 128
    y_s = jax.random.normal(k1, (B, C), dtype=jnp.float32) * 2.0
    y_t = jax.random.normal(k2, (B, C), dtype=jnp.float32) * 2.0
    loss = jax.block_until_ready(distill_kl_logit_stand(y_s, y_t, temp))
    ref = _reference(y_s, y_t, temp)
    assert jnp.allclose(loss, ref, rtol=1e-4, atol=1e-8), (loss, ref)

    # Ragged case: B not a multiple of the tile, C not a multiple of 128
    # (exercises the unpadded full-C block + in-kernel row masking).
    B2, C2 = 10, 100
    y_s2 = jax.random.normal(k3, (B2, C2), dtype=jnp.float32) * 2.0
    y_t2 = jax.random.normal(k4, (B2, C2), dtype=jnp.float32) * 2.0
    loss2 = jax.block_until_ready(distill_kl_logit_stand(y_s2, y_t2, temp))
    ref2 = _reference(y_s2, y_t2, temp)
    assert jnp.allclose(loss2, ref2, rtol=1e-4, atol=1e-8), (loss2, ref2)

    print("KERNEL_OK")
</pallas_src>

<mosaic_0001>
module attributes {stable_mosaic.version = 11 : i64} {
  func.func @_kd_block_kernel(%arg0: i32, %arg1: memref<1xf32, #tpu.memory_space<smem>>, %arg2: memref<8x128xf32, #tpu.memory_space<vmem>>, %arg3: memref<8x128xf32, #tpu.memory_space<vmem>>, %arg4: memref<1x8x128xf32, #tpu.memory_space<vmem>>) attributes {dimension_semantics = [#tpu.dimension_semantics<parallel>], iteration_bounds = array<i64: 1>, scalar_prefetch = 0 : i64, scratch_operands = 0 : i64, tpu.core_type = #tpu.core_type<tc>, window_params = [{transform_indices = @transform_0, window_bounds = array<i64: 1>}, {transform_indices = @transform_1, window_bounds = array<i64: 8, 128>}, {transform_indices = @transform_2, window_bounds = array<i64: 8, 128>}, {transform_indices = @transform_3, window_bounds = array<i64: 1, 8, 128>}]} {
    %c0 = arith.constant 0 : index
    %0 = memref.load %arg1[%c0] : memref<1xf32, #tpu.memory_space<smem>>
    %c0_0 = arith.constant 0 : index
    %c0_1 = arith.constant 0 : index
    %1 = vector.load %arg2[%c0_0, %c0_1] : memref<8x128xf32, #tpu.memory_space<vmem>>, vector<8x128xf32>
    %c0_2 = arith.constant 0 : index
    %c0_3 = arith.constant 0 : index
    %2 = vector.load %arg3[%c0_2, %c0_3] : memref<8x128xf32, #tpu.memory_space<vmem>>, vector<8x128xf32>
    %cst = arith.constant dense<0.000000e+00> : vector<8xf32>
    %3 = vector.multi_reduction <add>, %1, %cst [1] : vector<8x128xf32> to vector<8xf32>
    %4 = vector.shape_cast %3 : vector<8xf32> to vector<8x1xf32>
    %cst_4 = arith.constant 7.812500e-03 : f32
    %5 = vector.broadcast %cst_4 : f32 to vector<8x1xf32>
    %6 = arith.mulf %4, %5 : vector<8x1xf32>
    %7 = vector.broadcast %6 : vector<8x1xf32> to vector<8x128xf32>
    %8 = arith.subf %1, %7 : vector<8x128xf32>
    %9 = arith.mulf %8, %8 : vector<8x128xf32>
    %cst_5 = arith.constant dense<0.000000e+00> : vector<8xf32>
    %10 = vector.multi_reduction <add>, %9, %cst_5 [1] : vector<8x128xf32> to vector<8xf32>
    %11 = vector.shape_cast %10 : vector<8xf32> to vector<8x1xf32>
    %cst_6 = arith.constant 0.00787401571 : f32
    %12 = vector.broadcast %cst_6 : f32 to vector<8x1xf32>
    %13 = arith.mulf %11, %12 : vector<8x1xf32>
    %14 = math.sqrt %13 : vector<8x1xf32>
    %cst_7 = arith.constant 1.000000e-07 : f32
    %15 = vector.broadcast %cst_7 : f32 to vector<8x1xf32>
    %16 = arith.addf %15, %14 : vector<8x1xf32>
    %17 = vector.broadcast %0 : f32 to vector<8x1xf32>
    %18 = arith.mulf %16, %17 : vector<8x1xf32>
    %19 = tpu.reciprocal %18 : vector<8x1xf32> -> vector<8x1xf32>
    %20 = vector.broadcast %19 : vector<8x1xf32> to vector<8x128xf32>
    %21 = arith.mulf %8, %20 : vector<8x128xf32>
    %cst_8 = arith.constant dense<0.000000e+00> : vector<8xf32>
    %22 = vector.multi_reduction <add>, %2, %cst_8 [1] : vector<8x128xf32> to vector<8xf32>
    %23 = vector.shape_cast %22 : vector<8xf32> to vector<8x1xf32>
    %cst_9 = arith.constant 7.812500e-03 : f32
    %24 = vector.broadcast %cst_9 : f32 to vector<8x1xf32>
    %25 = arith.mulf %23, %24 : vector<8x1xf32>
    %26 = vector.broadcast %25 : vector<8x1xf32> to vector<8x128xf32>
    %27 = arith.subf %2, %26 : vector<8x128xf32>
    %28 = arith.mulf %27, %27 : vector<8x128xf32>
    %cst_10 = arith.constant dense<0.000000e+00> : vector<8xf32>
    %29 = vector.multi_reduction <add>, %28, %cst_10 [1] : vector<8x128xf32> to vector<8xf32>
    %30 = vector.shape_cast %29 : vector<8xf32> to vector<8x1xf32>
    %cst_11 = arith.constant 0.00787401571 : f32
    %31 = vector.broadcast %cst_11 : f32 to vector<8x1xf32>
    %32 = arith.mulf %30, %31 : vector<8x1xf32>
    %33 = math.sqrt %32 : vector<8x1xf32>
    %cst_12 = arith.constant 1.000000e-07 : f32
    %34 = vector.broadcast %cst_12 : f32 to vector<8x1xf32>
    %35 = arith.addf %34, %33 : vector<8x1xf32>
    %36 = vector.broadcast %0 : f32 to vector<8x1xf32>
    %37 = arith.mulf %35, %36 : vector<8x1xf32>
    %38 = tpu.reciprocal %37 : vector<8x1xf32> -> vector<8x1xf32>
    %39 = vector.broadcast %38 : vector<8x1xf32> to vector<8x128xf32>
    %40 = arith.mulf %27, %39 : vector<8x128xf32>
    %cst_13 = arith.constant dense<0xFF800000> : vector<8xf32>
    %41 = vector.multi_reduction <maximumf>, %21, %cst_13 [1] : vector<8x128xf32> to vector<8xf32>
    %42 = vector.shape_cast %41 : vector<8xf32> to vector<8x1xf32>
    %43 = vector.broadcast %42 : vector<8x1xf32> to vector<8x128xf32>
    %44 = arith.subf %21, %43 : vector<8x128xf32>
    %45 = math.exp %44 : vector<8x128xf32>
    %cst_14 = arith.constant dense<0.000000e+00> : vector<8xf32>
    %46 = vector.multi_reduction <add>, %45, %cst_14 [1] : vector<8x128xf32> to vector<8xf32>
    %47 = vector.shape_cast %46 : vector<8xf32> to vector<8x1xf32>
    %48 = math.log %47 : vector<8x1xf32>
    %49 = vector.broadcast %48 : vector<8x1xf32> to vector<8x128xf32>
    %50 = arith.subf %44, %49 : vector<8x128xf32>
    %cst_15 = arith.constant dense<0xFF800000> : vector<8xf32>
    %51 = vector.multi_reduction <maximumf>, %40, %cst_15 [1] : vector<8x128xf32> to vector<8xf32>
    %52 = vector.shape_cast %51 : vector<8xf32> to vector<8x1xf32>
    %53 = vector.broadcast %52 : vector<8x1xf32> to vector<8x128xf32>
    %54 = arith.subf %40, %53 : vector<8x128xf32>
    %55 = math.exp %54 : vector<8x128xf32>
    %cst_16 = arith.constant dense<0.000000e+00> : vector<8xf32>
    %56 = vector.multi_reduction <add>, %55, %cst_16 [1] : vector<8x128xf32> to vector<8xf32>
    %57 = vector.shape_cast %56 : vector<8xf32> to vector<8x1xf32>
    %58 = tpu.reciprocal %57 : vector<8x1xf32> -> vector<8x1xf32>
    %59 = vector.broadcast %58 : vector<8x1xf32> to vector<8x128xf32>
    %60 = arith.mulf %55, %59 : vector<8x128xf32>
    %61 = math.log %57 : vector<8x1xf32>
    %62 = vector.broadcast %61 : vector<8x1xf32> to vector<8x128xf32>
    %63 = arith.subf %54, %62 : vector<8x128xf32>
    %64 = arith.subf %63, %50 : vector<8x128xf32>
    %65 = arith.mulf %60, %64 : vector<8x128xf32>
    %cst_17 = arith.constant dense<0.000000e+00> : vector<8xf32>
    %66 = vector.multi_reduction <add>, %65, %cst_17 [1] : vector<8x128xf32> to vector<8xf32>
    %67 = vector.shape_cast %66 : vector<8xf32> to vector<8x1xf32>
    %68 = vector.shape_cast %67 : vector<8x1xf32> to vector<1x8x1xf32>
    %cst_18 = arith.constant dense<0.000000e+00> : vector<1xf32>
    %69 = vector.multi_reduction <add>, %68, %cst_18 [1, 2] : vector<1x8x1xf32> to vector<1xf32>
    %70 = vector.shape_cast %69 : vector<1xf32> to vector<1x1x1xf32>
    %71 = vector.extract %70[0, 0, 0] : f32 from vector<1x1x1xf32>
    %72 = vector.broadcast %71 : f32 to vector<1x8x128xf32>
    %c0_19 = arith.constant 0 : index
    %c0_20 = arith.constant 0 : index
    %c0_21 = arith.constant 0 : index
    %73 = vector.load %arg4[%c0_19, %c0_20, %c0_21] : memref<1x8x128xf32, #tpu.memory_space<vmem>>, vector<1x8x128xf32>
    tpu.vector_store %arg4[%c0_19, %c0_20, %c0_21], %72 {strides = array<i32>} : memref<1x8x128xf32, #tpu.memory_space<vmem>>, vector<1x8x128xf32>,
    return
  }
  func.func @transform_0(%arg0: i32) -> i32 {
    %c0_i32 = arith.constant 0 : i32
    %c0_i32_0 = arith.constant 0 : i32
    return %c0_i32 : i32
  }
  func.func @transform_1(%arg0: i32) -> (i32, i32) {
    %c0_i32 = arith.constant 0 : i32
    %c0_i32_0 = arith.constant 0 : i32
    return %arg0, %c0_i32 : i32, i32
  }
  func.func @transform_2(%arg0: i32) -> (i32, i32) {
    %c0_i32 = arith.constant 0 : i32
    %c0_i32_0 = arith.constant 0 : i32
    return %arg0, %c0_i32 : i32, i32
  }
  func.func @transform_3(%arg0: i32) -> (i32, i32, i32) {
    %c0_i32 = arith.constant 0 : i32
    %c0_i32_0 = arith.constant 0 : i32
    %c0_i32_1 = arith.constant 0 : i32
    return %arg0, %c0_i32, %c0_i32_0 : i32, i32, i32
  }
}

</mosaic_0001>

<llo_original>
// kernel: _distill_kl_impl.1
$region0: #{_distill_kl_impl.1}
  #allocation0 [shape = 'u32[]', space=smem, size = 0x4, offset = 0x4, fixed_abs, tag = 'smem constant byte address 0x4 - core index']
  #allocation1 [shape = 'u32[144,128]{1,0:T(1,128)}', space=vmem, size = 0x12000, scoped, tag = 'internal scratch']
  #allocation2 [shape = 'f32[1]{0:T(128)S(6)}', space=smem, size = 0x200, scoped, tag = 'scoped memory for _distill_kl_impl.1']
  %s0 = inlined_call_operand.<no memory space> [shape: f32[1], index: 0, kind: input, shape index: {}]
  %s1 = inlined_call_operand.hbm [shape: f32[8,128], index: 1, kind: input, shape index: {}]
  %s2 = inlined_call_operand.hbm [shape: f32[8,128], index: 2, kind: input, shape index: {}]
  %s3 = inlined_call_operand.vmem [shape: f32[1,8,128], index: 3, kind: output, shape index: {}]
  %s4 = sld [smem:[#allocation0]]
  $region30: #{_distill_kl_impl.1} parent=0
    _
  %s6 = ssub.s32 1, %s4
  %s7 = scalar_select 0, %s6, %s4
  %8 = sst [smem:[#allocation2]] %s0
  $region1: #{_distill_kl_impl.1} parent=0
    #allocation3 [shape = 'u8[4096]{0}', space=vmem, size = 0x1000, scoped, tag = 'input window, operand 1, single buffered']
    #allocation4 [shape = 's32[1]{0}', space=sflag, size = 0x4, scoped, tag = 'scoped memory for _distill_kl_impl.1']
    #allocation5 [shape = 'u8[4096]{0}', space=vmem, size = 0x1000, scoped, tag = 'input window, operand 2, single buffered']
    #allocation6 [shape = 's32[1]{0}', space=sflag, size = 0x4, scoped, tag = 'scoped memory for _distill_kl_impl.1']
    %9 = vsyncpa [#allocation4], 0
    %10 = vsyncpa [#allocation6], 0
    // Predicated region
    $region2: #{_distill_kl_impl.1} parent=1 // pred_check
      _
    $region3: #{_distill_kl_impl.1} parent=1 // pred_check_branch
      %12 = sbr.rel (0) target = $region5
    $region4: #{_distill_kl_impl.1} parent=1 // pred_region
      _
    $region5: #{_distill_kl_impl.1} parent=1 // pred_fallthru
      _
    // Predicated region
    $region6: #{_distill_kl_impl.1} parent=1 // pred_check
      _
    $region7: #{_distill_kl_impl.1} parent=1 // pred_check_branch
      %14 = sbr.rel (0) target = $region9
    $region8: #{_distill_kl_impl.1} parent=1 // pred_region
      %s16 = ssub.s32 128, 128
      %17 = vsyncadd [#allocation4], %s16
      %s19 = sshll.u32 [#allocation3], 4
      %s20 = int_to_ptr.vmem [resolvable:$true] %s19
      %22 = dma.hbm_to_vmem [thread:$0]  %s1, 128, %s20, [#allocation4]
    $region9: #{_distill_kl_impl.1} parent=1 // pred_fallthru
      _
    // Predicated region
    $region10: #{_distill_kl_impl.1} parent=1 // pred_check
      _
    $region11: #{_distill_kl_impl.1} parent=1 // pred_check_branch
      %24 = sbr.rel (0) target = $region13
    $region12: #{_distill_kl_impl.1} parent=1 // pred_region
      %s26 = ssub.s32 128, 128
      %27 = vsyncadd [#allocation6], %s26
      %s29 = sshll.u32 [#allocation5], 4
      %s30 = int_to_ptr.vmem [resolvable:$true] %s29
      %32 = dma.hbm_to_vmem [thread:$0]  %s2, 128, %s30, [#allocation6]
    $region13: #{_distill_kl_impl.1} parent=1 // pred_fallthru
      _
    // Predicated region
    $region14: #{_distill_kl_impl.1} parent=1 // pred_check
      _
    $region15: #{_distill_kl_impl.1} parent=1 // pred_check_branch
      %34 = sbr.rel (0) target = $region17
    $region16: #{_distill_kl_impl.1} parent=1 // pred_region
      %35 = dma.done [#allocation4], 128
    $region17: #{_distill_kl_impl.1} parent=1 // pred_fallthru
      _
    // Predicated region
    $region18: #{_distill_kl_impl.1} parent=1 // pred_check
      _
    $region19: #{_distill_kl_impl.1} parent=1 // pred_check_branch
      %37 = sbr.rel (0) target = $region21
    $region20: #{_distill_kl_impl.1} parent=1 // pred_region
      %38 = dma.done [#allocation6], 128
    $region21: #{_distill_kl_impl.1} parent=1 // pred_fallthru
      _
    %s39 = sld [smem:[#allocation2]]
    %v40 = vld [vmem:[#allocation3] sm:$0xff]
    %v41 = vld [vmem:[#allocation5] sm:$0xff]
    %42 = vadd.xlane.f32.xlu0 %v40
    %v43 = vpop.xlane.xlu0 %42
    %v44 = vmul.f32 %v43, 0.0078125
    %v45 = vsub.f32 %v40, %v44
    %v46 = vmul.f32 %v45, %v45
    %47 = vadd.xlane.f32.xlu0 %v46
    %v48 = vpop.xlane.xlu0 %47
    %v49 = vmul.f32 %v48, 0.007874016
    %v50 = vrsqrt.pop %v49
    %v51 = vmul.f32 %v49, %v50
    %vm52 = vcmp.eq.f32.partialorder %v49, inf
    %v53 = vsel %vm52, %v49, %v51
    %vm54 = vcmp.eq.f32.partialorder %v49, 0.0
    %v55 = vand.u32 %v49, 2147483648
    %v56 = vsel %vm54, %v55, %v53
    %v57 = vadd.f32 %v56, 1e-07
    %v58 = vstv %s39
    %v59 = vmul.f32 %v57, %v58
    %v60 = vrcp.pop %v59
    %v61 = vmul.f32 %v45, %v60
    %62 = vadd.xlane.f32.xlu0 %v41
    %v63 = vpop.xlane.xlu0 %62
    %v64 = vmul.f32 %v63, 0.0078125
    %v65 = vsub.f32 %v41, %v64
    %v66 = vmul.f32 %v65, %v65
    %67 = vadd.xlane.f32.xlu0 %v66
    %v68 = vpop.xlane.xlu0 %67
    %v69 = vmul.f32 %v68, 0.007874016
    %v70 = vrsqrt.pop %v69
    %v71 = vmul.f32 %v69, %v70
    %vm72 = vcmp.eq.f32.partialorder %v69, inf
    %v73 = vsel %vm72, %v69, %v71
    %vm74 = vcmp.eq.f32.partialorder %v69, 0.0
    %v75 = vand.u32 %v69, 2147483648
    %v76 = vsel %vm74, %v75, %v73
    %v77 = vadd.f32 %v76, 1e-07
    %v78 = vmul.f32 %v77, %v58
    %v79 = vrcp.pop %v78
    %v80 = vmul.f32 %v65, %v79
    %81 = vmax.xlane.f32.xlu0 %v61
    %v82 = vpop.xlane.xlu0 %81
    %v83 = vsub.f32 %v61, %v82
    %v84 = vmul.f32 %v83, 1.442695
    %v85 = vpow.pop %v84
    %86 = vadd.xlane.f32.xlu0 %v85
    %v87 = vpop.xlane.xlu0 %86
    %v88 = vlog2.pop %v87
    %v89 = vmul.f32 %v88, 0.6931472
    %v90 = vsub.f32 %v83, %v89
    %91 = vmax.xlane.f32.xlu0 %v80
    %v92 = vpop.xlane.xlu0 %91
    %v93 = vsub.f32 %v80, %v92
    %v94 = vmul.f32 %v93, 1.442695
    %v95 = vpow.pop %v94
    %96 = vadd.xlane.f32.xlu0 %v95
    %v97 = vpop.xlane.xlu0 %96
    %v98 = vrcp.pop %v97
    %v99 = vmul.f32 %v95, %v98
    %v100 = vlog2.pop %v97
    %v101 = vmul.f32 %v100, 0.6931472
    %v102 = vsub.f32 %v93, %v101
    %v103 = vsub.f32 %v102, %v90
    %v104 = vmul.f32 %v99, %v103
    %105 = vadd.xlane.f32.xlu0 %v104
    %v106 = vpop.xlane.xlu0 %105
    %vm107 = vcmask 7168
    %v108 = vsel %vm107, %v106, 0.0
    %109 = vadd.xlane.f32.xlu0 %v108
    %v110 = vpop.xlane.xlu0 %109
    %v111 = vrot.slane %v110, 4
    %v112 = vadd.f32 %v110, %v111
    %v113 = vrot.slane %v112, 2
    %v114 = vadd.f32 %v112, %v113
    %v115 = vrot.slane %v114, 1
    %v116 = vadd.f32 %v114, %v115
    %s117 = vtos %v116
    %v118 = vstv %s117
    %119 = vst [vmem:[%s3] sm:$0xff] %v118
    // Predicated region
    $region22: #{_distill_kl_impl.1} parent=1 // pred_check
      _
    $region23: #{_distill_kl_impl.1} parent=1 // pred_check_branch
      %121 = sbr.rel (0) target = $region25
    $region24: #{_distill_kl_impl.1} parent=1 // pred_region
      _
    $region25: #{_distill_kl_impl.1} parent=1 // pred_fallthru
      _
    // Predicated region
    $region26: #{_distill_kl_impl.1} parent=1 // pred_check
      _
    $region27: #{_distill_kl_impl.1} parent=1 // pred_check_branch
      %123 = sbr.rel (0) target = $region29
    $region28: #{_distill_kl_impl.1} parent=1 // pred_region
      _
    $region29: #{_distill_kl_impl.1} parent=1 // pred_fallthru
      _
    %124 = vsyncpa [#allocation4], 1
    %125 = vsyncpa [#allocation6], 1

</llo_original>
